<compile_context>
chip_gen: v6e
topology: v6e:2x2x1
jax: 0.10.0
libtpu: 0.0.40
codegen_flags: <defaults>
</compile_context>

<pallas_src>
import functools

import jax
import jax.numpy as jnp
from jax.experimental import pallas as pl
from jax.experimental.pallas import tpu as pltpu

IN_F = 4        # Iris features
HID = 100       # hidden width
N_CLS = 3       # classes
HID_P = 128     # hidden padded to native lane width (layer-1 output lanes)
CLS_P = 8       # classes padded to one sublane group (3 -> 8)
NEG_BIG = -1e30  # pad-class bias; exp(NEG_BIG - max) underflows to exactly 0
                 # (finite, so no NaN/Inf) because the row max is always a
                 # real, moderate logit.  Revisit if dtype/net ever changes.


def _round_up(n, m):
    return (n + m - 1) // m * m


def iris_mlp_kernel(x_ref, w1_ref, b1_ref, w23_ref, b23_ref, o_ref):
    # Transposed layout: batch on lanes, features/classes on sublanes.
    x = x_ref[...]                                        # [IN_F, TB]   f32
    w1 = w1_ref[...]                                      # [HID_P, IN_F]
    # --- Linear(4, 100->128) + ReLU --------------------------------------
    # K=4 would be ~97% padding on the MXU; do 4 unrolled VPU broadcast-FMAs
    # instead:  h^T[j, b] = b1[j] + sum_k W1[k, j] * x[k, b].
    h = b1_ref[...] + w1[:, 0:1] * x[0:1, :]              # [HID_P, TB]
    for k in range(1, IN_F):
        h = h + w1[:, k:k + 1] * x[k:k + 1, :]
    h = jnp.maximum(h, 0.0)
    # --- Folded Linear(100,100) @ Linear(100,3): one tiny MXU matmul -----
    # logits^T = W23^T @ h^T   ([8,128] x [128,TB] -> [8,TB]).
    logits = jnp.dot(
        w23_ref[...], h,
        preferred_element_type=jnp.float32,
        precision=jax.lax.Precision.HIGHEST,
    ) + b23_ref[...]                                      # [CLS_P, TB]
    # --- Softmax over the 8-row sublane (class) axis ----------------------
    m = jnp.max(logits, axis=0, keepdims=True)            # [1, TB]
    e = jnp.exp(logits - m)                               # pad rows -> 0.0
    denom = jnp.sum(e, axis=0, keepdims=True)             # [1, TB]
    inv = pl.reciprocal(denom, approx=True)
    inv = inv * (2.0 - denom * inv)       # one Newton step -> f32 accuracy
    o_ref[...] = (e * inv).astype(o_ref.dtype)            # [CLS_P, TB]


def pack_params(params):
    """Fold the two back-to-back linears, transpose, and pad (done once)."""
    w1, b1, w2, b2, w3, b3 = params        # [in, out] layout, biases [1, out]
    hi = jax.lax.Precision.HIGHEST
    w23 = jnp.dot(w2, w3, precision=hi)                    # [100, 3]
    b23 = jnp.dot(b2, w3, precision=hi) + b3               # [1, 3]
    # Transposed & padded for the sublane-class / lane-batch layout.
    w1t = jnp.zeros((HID_P, IN_F), jnp.float32).at[:HID, :].set(w1.T)
    b1t = jnp.zeros((HID_P, 1), jnp.float32).at[:HID, :].set(b1.T)
    w23t = jnp.zeros((CLS_P, HID_P), jnp.float32).at[:N_CLS, :HID].set(w23.T)
    b23t = jnp.full((CLS_P, 1), NEG_BIG, jnp.float32).at[:N_CLS, :].set(b23.T)
    return w1t, b1t, w23t, b23t


@functools.partial(jax.jit, static_argnames=("tb",))
def iris_net_forward(x, packed_params, *, tb=8192):
    w1t, b1t, w23t, b23t = packed_params
    B = x.shape[0]

    # Balanced, lane-aligned batch tiling.  Force >=2 grid steps for larger
    # batches so the "parallel" axis shards across v7x's 2 TensorCores.
    n_steps = max(1, pl.cdiv(B, tb))
    if n_steps == 1 and B > 256:
        n_steps = 2
    TB = _round_up(pl.cdiv(B, n_steps), 128)     # batch tile (lane-aligned)
    Bp = _round_up(B, TB)
    grid = (Bp // TB,)

    # Pre-transpose x -> [IN_F, Bp]: lane-dense contiguous rows, pad columns
    # are zeros (their softmax output is finite garbage and gets sliced off).
    xt = jnp.pad(x.T, ((0, 0), (0, Bp - B)))

    const = lambda i: (0, 0)               # weights pinned across grid steps
    cost = pl.CostEstimate(
        flops=2 * Bp * (IN_F * HID_P + HID_P * CLS_P) + 6 * Bp * CLS_P,
        transcendentals=Bp * (CLS_P + 1),
        bytes_accessed=4 * (IN_F * Bp + CLS_P * Bp
                            + HID_P * IN_F + HID_P + CLS_P * HID_P + CLS_P),
    )

    out = pl.pallas_call(
        iris_mlp_kernel,
        out_shape=jax.ShapeDtypeStruct((CLS_P, Bp), jnp.float32),
        grid=grid,
        in_specs=[
            pl.BlockSpec((IN_F, TB), lambda i: (0, i)),    # x^T: tiled batch
            pl.BlockSpec((HID_P, IN_F), const),            # W1^T
            pl.BlockSpec((HID_P, 1), const),               # b1 (column)
            pl.BlockSpec((CLS_P, HID_P), const),           # W23^T
            pl.BlockSpec((CLS_P, 1), const),               # b23 (column)
        ],
        out_specs=pl.BlockSpec((CLS_P, TB), lambda i: (0, i)),
        compiler_params=pltpu.CompilerParams(
            dimension_semantics=("parallel",)),
        cost_estimate=cost,
    )(xt, w1t, b1t, w23t, b23t)
    return out[:N_CLS, :B].T


def init_params(key):
    """Deterministic init mimicking nn.Linear defaults (uniform +-1/sqrt(fan_in))."""
    def linear(key, fan_in, fan_out):
        kw, kb = jax.random.split(key)
        bound = 1.0 / jnp.sqrt(jnp.float32(fan_in))
        w = jax.random.uniform(kw, (fan_in, fan_out), jnp.float32, -bound, bound)
        b = jax.random.uniform(kb, (1, fan_out), jnp.float32, -bound, bound)
        return w, b

    k1, k2, k3 = jax.random.split(key, 3)
    w1, b1 = linear(k1, IN_F, HID)
    w2, b2 = linear(k2, HID, HID)
    w3, b3 = linear(k3, HID, N_CLS)
    return (w1, b1, w2, b2, w3, b3)


def reference_forward(x, params):
    """Faithful (unfolded) forward pass of the PyTorch module, f32."""
    w1, b1, w2, b2, w3, b3 = params
    hi = jax.lax.Precision.HIGHEST
    h1 = jnp.maximum(jnp.dot(x, w1, precision=hi) + b1, 0.0)
    h2 = jnp.dot(h1, w2, precision=hi) + b2
    logits = jnp.dot(h2, w3, precision=hi) + b3
    return jax.nn.softmax(logits, axis=1)


if __name__ == "__main__":
    key = jax.random.PRNGKey(0)
    kx, kp = jax.random.split(key)

    params = init_params(kp)
    packed = pack_params(params)          # fold + transpose + pad once

    # Iris-shaped input: small batch, 4 features.
    B = 8
    x = jax.random.normal(kx, (B, IN_F), jnp.float32)

    out = jax.block_until_ready(iris_net_forward(x, packed))
    ref = reference_forward(x, params)
    assert out.shape == (B, N_CLS)
    assert jnp.allclose(out, ref, atol=1e-4, rtol=1e-4)
    assert jnp.allclose(jnp.sum(out, axis=1), jnp.ones((B,)), atol=1e-5)

    # Exercise the batch grid (multiple tiles + ragged batch padding).
    B2 = 300
    x2 = jax.random.normal(jax.random.PRNGKey(1), (B2, IN_F), jnp.float32)
    out2 = jax.block_until_ready(iris_net_forward(x2, packed, tb=128))
    ref2 = reference_forward(x2, params)
    assert out2.shape == (B2, N_CLS)
    assert jnp.allclose(out2, ref2, atol=1e-4, rtol=1e-4)
    assert jnp.allclose(jnp.sum(out2, axis=1), jnp.ones((B2,)), atol=1e-5)

    # Exercise the forced 2-step split (v7x dual-TensorCore path) at default tb.
    B3 = 1000
    x3 = jax.random.normal(jax.random.PRNGKey(2), (B3, IN_F), jnp.float32)
    out3 = jax.block_until_ready(iris_net_forward(x3, packed))
    ref3 = reference_forward(x3, params)
    assert out3.shape == (B3, N_CLS)
    assert jnp.allclose(out3, ref3, atol=1e-4, rtol=1e-4)
    assert jnp.allclose(jnp.sum(out3, axis=1), jnp.ones((B3,)), atol=1e-5)

    print("KERNEL_OK")
</pallas_src>

<mosaic_0001>
module attributes {stable_mosaic.version = 11 : i64} {
  func.func @iris_mlp_kernel(%arg0: i32, %arg1: memref<4x128xf32, #tpu.memory_space<vmem>>, %arg2: memref<128x4xf32, #tpu.memory_space<vmem>>, %arg3: memref<128x1xf32, #tpu.memory_space<vmem>>, %arg4: memref<8x128xf32, #tpu.memory_space<vmem>>, %arg5: memref<8x1xf32, #tpu.memory_space<vmem>>, %arg6: memref<8x128xf32, #tpu.memory_space<vmem>>) attributes {dimension_semantics = [#tpu.dimension_semantics<parallel>], iteration_bounds = array<i64: 1>, scalar_prefetch = 0 : i64, scratch_operands = 0 : i64, tpu.core_type = #tpu.core_type<tc>, window_params = [{transform_indices = @transform_0, window_bounds = array<i64: 4, 128>}, {pipeline_mode = #tpu.pipeline_mode<synchronous>, transform_indices = @transform_1, window_bounds = array<i64: 128, 4>}, {pipeline_mode = #tpu.pipeline_mode<synchronous>, transform_indices = @transform_2, window_bounds = array<i64: 128, 1>}, {pipeline_mode = #tpu.pipeline_mode<synchronous>, transform_indices = @transform_3, window_bounds = array<i64: 8, 128>}, {pipeline_mode = #tpu.pipeline_mode<synchronous>, transform_indices = @transform_4, window_bounds = array<i64: 8, 1>}, {transform_indices = @transform_5, window_bounds = array<i64: 8, 128>}]} {
    %c0 = arith.constant 0 : index
    %c0_0 = arith.constant 0 : index
    %0 = vector.load %arg1[%c0, %c0_0] : memref<4x128xf32, #tpu.memory_space<vmem>>, vector<4x128xf32>
    %c0_1 = arith.constant 0 : index
    %c0_2 = arith.constant 0 : index
    %1 = vector.load %arg2[%c0_1, %c0_2] : memref<128x4xf32, #tpu.memory_space<vmem>>, vector<128x4xf32>
    %c0_3 = arith.constant 0 : index
    %c0_4 = arith.constant 0 : index
    %2 = vector.load %arg3[%c0_3, %c0_4] : memref<128x1xf32, #tpu.memory_space<vmem>>, vector<128x1xf32>
    %3 = vector.extract_strided_slice %1 {offsets = [0, 0], sizes = [128, 1], strides = [1, 1]} : vector<128x4xf32> to vector<128x1xf32>
    %4 = vector.extract_strided_slice %0 {offsets = [0, 0], sizes = [1, 128], strides = [1, 1]} : vector<4x128xf32> to vector<1x128xf32>
    %5 = vector.broadcast %3 : vector<128x1xf32> to vector<128x128xf32>
    %6 = vector.broadcast %4 : vector<1x128xf32> to vector<128x128xf32>
    %7 = arith.mulf %5, %6 : vector<128x128xf32>
    %8 = vector.broadcast %2 : vector<128x1xf32> to vector<128x128xf32>
    %9 = arith.addf %8, %7 : vector<128x128xf32>
    %10 = vector.extract_strided_slice %1 {offsets = [0, 1], sizes = [128, 1], strides = [1, 1]} : vector<128x4xf32> to vector<128x1xf32>
    %11 = vector.extract_strided_slice %0 {offsets = [1, 0], sizes = [1, 128], strides = [1, 1]} : vector<4x128xf32> to vector<1x128xf32>
    %12 = vector.broadcast %10 : vector<128x1xf32> to vector<128x128xf32>
    %13 = vector.broadcast %11 : vector<1x128xf32> to vector<128x128xf32>
    %14 = arith.mulf %12, %13 : vector<128x128xf32>
    %15 = arith.addf %9, %14 : vector<128x128xf32>
    %16 = vector.extract_strided_slice %1 {offsets = [0, 2], sizes = [128, 1], strides = [1, 1]} : vector<128x4xf32> to vector<128x1xf32>
    %17 = vector.extract_strided_slice %0 {offsets = [2, 0], sizes = [1, 128], strides = [1, 1]} : vector<4x128xf32> to vector<1x128xf32>
    %18 = vector.broadcast %16 : vector<128x1xf32> to vector<128x128xf32>
    %19 = vector.broadcast %17 : vector<1x128xf32> to vector<128x128xf32>
    %20 = arith.mulf %18, %19 : vector<128x128xf32>
    %21 = arith.addf %15, %20 : vector<128x128xf32>
    %22 = vector.extract_strided_slice %1 {offsets = [0, 3], sizes = [128, 1], strides = [1, 1]} : vector<128x4xf32> to vector<128x1xf32>
    %23 = vector.extract_strided_slice %0 {offsets = [3, 0], sizes = [1, 128], strides = [1, 1]} : vector<4x128xf32> to vector<1x128xf32>
    %24 = vector.broadcast %22 : vector<128x1xf32> to vector<128x128xf32>
    %25 = vector.broadcast %23 : vector<1x128xf32> to vector<128x128xf32>
    %26 = arith.mulf %24, %25 : vector<128x128xf32>
    %27 = arith.addf %21, %26 : vector<128x128xf32>
    %cst = arith.constant 0.000000e+00 : f32
    %28 = vector.broadcast %cst : f32 to vector<128x128xf32>
    %29 = arith.maximumf %27, %28 : vector<128x128xf32>
    %c0_5 = arith.constant 0 : index
    %c0_6 = arith.constant 0 : index
    %30 = vector.load %arg4[%c0_5, %c0_6] : memref<8x128xf32, #tpu.memory_space<vmem>>, vector<8x128xf32>
    %cst_7 = arith.constant dense<0.000000e+00> : vector<8x128xf32>
    %31 = tpu.matmul %30, %29, %cst_7 {dimension_numbers = #tpu.dot_dimension_numbers<[1], [0], [0], [1], [0, 0, 1, 1], [], []>, precision = #tpu.contract_precision<fp32>} : vector<8x128xf32>, vector<128x128xf32>, vector<8x128xf32> -> vector<8x128xf32>
    %c0_8 = arith.constant 0 : index
    %c0_9 = arith.constant 0 : index
    %32 = vector.load %arg5[%c0_8, %c0_9] : memref<8x1xf32, #tpu.memory_space<vmem>>, vector<8x1xf32>
    %33 = vector.broadcast %32 : vector<8x1xf32> to vector<8x128xf32>
    %34 = arith.addf %31, %33 : vector<8x128xf32>
    %cst_10 = arith.constant dense<0xFF800000> : vector<128xf32>
    %35 = vector.multi_reduction <maximumf>, %34, %cst_10 [0] : vector<8x128xf32> to vector<128xf32>
    %36 = vector.shape_cast %35 : vector<128xf32> to vector<1x128xf32>
    %37 = vector.broadcast %36 : vector<1x128xf32> to vector<8x128xf32>
    %38 = arith.subf %34, %37 : vector<8x128xf32>
    %39 = math.exp %38 : vector<8x128xf32>
    %cst_11 = arith.constant dense<0.000000e+00> : vector<128xf32>
    %40 = vector.multi_reduction <add>, %39, %cst_11 [0] : vector<8x128xf32> to vector<128xf32>
    %41 = vector.shape_cast %40 : vector<128xf32> to vector<1x128xf32>
    %42 = tpu.reciprocal %41 {approx = true} : vector<1x128xf32> -> vector<1x128xf32>
    %43 = arith.mulf %41, %42 : vector<1x128xf32>
    %cst_12 = arith.constant 2.000000e+00 : f32
    %44 = vector.broadcast %cst_12 : f32 to vector<1x128xf32>
    %45 = arith.subf %44, %43 : vector<1x128xf32>
    %46 = arith.mulf %42, %45 : vector<1x128xf32>
    %47 = vector.broadcast %46 : vector<1x128xf32> to vector<8x128xf32>
    %48 = arith.mulf %39, %47 : vector<8x128xf32>
    %c0_13 = arith.constant 0 : index
    %c0_14 = arith.constant 0 : index
    %49 = vector.load %arg6[%c0_13, %c0_14] : memref<8x128xf32, #tpu.memory_space<vmem>>, vector<8x128xf32>
    tpu.vector_store %arg6[%c0_13, %c0_14], %48 {strides = array<i32>} : memref<8x128xf32, #tpu.memory_space<vmem>>, vector<8x128xf32>,
    return
  }
  func.func @transform_0(%arg0: i32) -> (i32, i32) {
    %c0_i32 = arith.constant 0 : i32
    %c0_i32_0 = arith.constant 0 : i32
    return %c0_i32, %arg0 : i32, i32
  }
  func.func @transform_1(%arg0: i32) -> (i32, i32) {
    %c0_i32 = arith.constant 0 : i32
    %c0_i32_0 = arith.constant 0 : i32
    %c0_i32_1 = arith.constant 0 : i32
    return %c0_i32, %c0_i32_0 : i32, i32
  }
  func.func @transform_2(%arg0: i32) -> (i32, i32) {
    %c0_i32 = arith.constant 0 : i32
    %c0_i32_0 = arith.constant 0 : i32
    %c0_i32_1 = arith.constant 0 : i32
    return %c0_i32, %c0_i32_0 : i32, i32
  }
  func.func @transform_3(%arg0: i32) -> (i32, i32) {
    %c0_i32 = arith.constant 0 : i32
    %c0_i32_0 = arith.constant 0 : i32
    %c0_i32_1 = arith.constant 0 : i32
    return %c0_i32, %c0_i32_0 : i32, i32
  }
  func.func @transform_4(%arg0: i32) -> (i32, i32) {
    %c0_i32 = arith.constant 0 : i32
    %c0_i32_0 = arith.constant 0 : i32
    %c0_i32_1 = arith.constant 0 : i32
    return %c0_i32, %c0_i32_0 : i32, i32
  }
  func.func @transform_5(%arg0: i32) -> (i32, i32) {
    %c0_i32 = arith.constant 0 : i32
    %c0_i32_0 = arith.constant 0 : i32
    return %c0_i32, %arg0 : i32, i32
  }
}

</mosaic_0001>

<llo_original>
// kernel: iris_net_forward.1
$region0: #{iris_net_forward.1}
  #allocation0 [shape = 'u32[]', space=smem, size = 0x4, offset = 0x4, fixed_abs, tag = 'smem constant byte address 0x4 - core index']
  #allocation1 [shape = 'u32[144,128]{1,0:T(1,128)}', space=vmem, size = 0x12000, scoped, tag = 'internal scratch']
  %s0 = inlined_call_operand.vmem [shape: f32[4,128], index: 0, kind: input, shape index: {}]
  %s1 = inlined_call_operand.vmem [shape: f32[128,4], index: 1, kind: input, shape index: {}]
  %s2 = inlined_call_operand.vmem [shape: f32[128,1], index: 2, kind: input, shape index: {}]
  %s3 = inlined_call_operand.vmem [shape: f32[8,128], index: 3, kind: input, shape index: {}]
  %s4 = inlined_call_operand.vmem [shape: f32[8,1], index: 4, kind: input, shape index: {}]
  %s5 = inlined_call_operand.vmem [shape: f32[8,128], index: 5, kind: output, shape index: {}]
  %s6 = sld [smem:[#allocation0]]
  $region30: #{iris_net_forward.1} parent=0
    _
  %s8 = ssub.s32 1, %s6
  %s9 = scalar_select 0, %s8, %s6
  // Predicated region
  $region2: #{iris_net_forward.1} parent=0 // pred_check
    _
  $region3: #{iris_net_forward.1} parent=0 // pred_check_branch
    %11 = sbr.rel (0) target = $region5
  $region4: #{iris_net_forward.1} parent=0 // pred_region
    _
  $region5: #{iris_net_forward.1} parent=0 // pred_fallthru
    _
  // Predicated region
  $region6: #{iris_net_forward.1} parent=0 // pred_check
    _
  $region7: #{iris_net_forward.1} parent=0 // pred_check_branch
    %13 = sbr.rel (0) target = $region9
  $region8: #{iris_net_forward.1} parent=0 // pred_region
    _
  $region9: #{iris_net_forward.1} parent=0 // pred_fallthru
    _
  // Predicated region
  $region10: #{iris_net_forward.1} parent=0 // pred_check
    _
  $region11: #{iris_net_forward.1} parent=0 // pred_check_branch
    %15 = sbr.rel (0) target = $region13
  $region12: #{iris_net_forward.1} parent=0 // pred_region
    _
  $region13: #{iris_net_forward.1} parent=0 // pred_fallthru
    _
  // Predicated region
  $region14: #{iris_net_forward.1} parent=0 // pred_check
    _
  $region15: #{iris_net_forward.1} parent=0 // pred_check_branch
    %17 = sbr.rel (0) target = $region17
  $region16: #{iris_net_forward.1} parent=0 // pred_region
    _
  $region17: #{iris_net_forward.1} parent=0 // pred_fallthru
    _
  // Predicated region
  $region18: #{iris_net_forward.1} parent=0 // pred_check
    _
  $region19: #{iris_net_forward.1} parent=0 // pred_check_branch
    %19 = sbr.rel (0) target = $region21
  $region20: #{iris_net_forward.1} parent=0 // pred_region
    _
  $region21: #{iris_net_forward.1} parent=0 // pred_fallthru
    _
  %v20 = vld [vmem:[%s0] sm:$0xf]
  %v21 = vld [vmem:[%s1] sm:$0xff]
  %v22 = vld [vmem:[%s1 + $0x8] sm:$0xff]
  %v23 = vld [vmem:[%s1 + $0x10] sm:$0xff]
  %v24 = vld [vmem:[%s1 + $0x18] sm:$0xff]
  %v25 = vld [vmem:[%s1 + $0x20] sm:$0xff]
  %v26 = vld [vmem:[%s1 + $0x28] sm:$0xff]
  %v27 = vld [vmem:[%s1 + $0x30] sm:$0xff]
  %v28 = vld [vmem:[%s1 + $0x38] sm:$0xff]
  %v29 = vld [vmem:[%s1 + $0x40] sm:$0xff]
  %v30 = vld [vmem:[%s1 + $0x48] sm:$0xff]
  %v31 = vld [vmem:[%s1 + $0x50] sm:$0xff]
  %v32 = vld [vmem:[%s1 + $0x58] sm:$0xff]
  %v33 = vld [vmem:[%s1 + $0x60] sm:$0xff]
  %v34 = vld [vmem:[%s1 + $0x68] sm:$0xff]
  %v35 = vld [vmem:[%s1 + $0x70] sm:$0xff]
  %v36 = vld [vmem:[%s1 + $0x78] sm:$0xff]
  %v37 = vld [vmem:[%s2] sm:$0xff]
  %v38 = vld [vmem:[%s2 + $0x8] sm:$0xff]
  %v39 = vld [vmem:[%s2 + $0x10] sm:$0xff]
  %v40 = vld [vmem:[%s2 + $0x18] sm:$0xff]
  %v41 = vld [vmem:[%s2 + $0x20] sm:$0xff]
  %v42 = vld [vmem:[%s2 + $0x28] sm:$0xff]
  %v43 = vld [vmem:[%s2 + $0x30] sm:$0xff]
  %v44 = vld [vmem:[%s2 + $0x38] sm:$0xff]
  %v45 = vld [vmem:[%s2 + $0x40] sm:$0xff]
  %v46 = vld [vmem:[%s2 + $0x48] sm:$0xff]
  %v47 = vld [vmem:[%s2 + $0x50] sm:$0xff]
  %v48 = vld [vmem:[%s2 + $0x58] sm:$0xff]
  %v49 = vld [vmem:[%s2 + $0x60] sm:$0xff]
  %v50 = vld [vmem:[%s2 + $0x68] sm:$0xff]
  %v51 = vld [vmem:[%s2 + $0x70] sm:$0xff]
  %v52 = vld [vmem:[%s2 + $0x78] sm:$0xff]
  %54 = vset.pattern.permute.xlu0 0
  %55 = vperm.xlu0 %54, %v21
  %v56 = vpop.permute.xlu0 %55
  %59 = vset.pattern.permute.xlu0 0
  %60 = vperm.xlu0 %59, %v22
  %v61 = vpop.permute.xlu0 %60
  %64 = vset.pattern.permute.xlu0 0
  %65 = vperm.xlu0 %64, %v23
  %v66 = vpop.permute.xlu0 %65
  %69 = vset.pattern.permute.xlu0 0
  %70 = vperm.xlu0 %69, %v24
  %v71 = vpop.permute.xlu0 %70
  %74 = vset.pattern.permute.xlu0 0
  %75 = vperm.xlu0 %74, %v25
  %v76 = vpop.permute.xlu0 %75
  %79 = vset.pattern.permute.xlu0 0
  %80 = vperm.xlu0 %79, %v26
  %v81 = vpop.permute.xlu0 %80
  %84 = vset.pattern.permute.xlu0 0
  %85 = vperm.xlu0 %84, %v27
  %v86 = vpop.permute.xlu0 %85
  %89 = vset.pattern.permute.xlu0 0
  %90 = vperm.xlu0 %89, %v28
  %v91 = vpop.permute.xlu0 %90
  %94 = vset.pattern.permute.xlu0 0
  %95 = vperm.xlu0 %94, %v29
  %v96 = vpop.permute.xlu0 %95
  %99 = vset.pattern.permute.xlu0 0
  %100 = vperm.xlu0 %99, %v30
  %v101 = vpop.permute.xlu0 %100
  %104 = vset.pattern.permute.xlu0 0
  %105 = vperm.xlu0 %104, %v31
  %v106 = vpop.permute.xlu0 %105
  %109 = vset.pattern.permute.xlu0 0
  %110 = vperm.xlu0 %109, %v32
  %v111 = vpop.permute.xlu0 %110
  %114 = vset.pattern.permute.xlu0 0
  %115 = vperm.xlu0 %114, %v33
  %v116 = vpop.permute.xlu0 %115
  %119 = vset.pattern.permute.xlu0 0
  %120 = vperm.xlu0 %119, %v34
  %v121 = vpop.permute.xlu0 %120
  %124 = vset.pattern.permute.xlu0 0
  %125 = vperm.xlu0 %124, %v35
  %v126 = vpop.permute.xlu0 %125
  %129 = vset.pattern.permute.xlu0 0
  %130 = vperm.xlu0 %129, %v36
  %v131 = vpop.permute.xlu0 %130
  %v133 = vlaneseq
  %v134 = vshrl.u32 %v133, 7
  %v135 = vsub.s32 0, %v134
  %v136 = vrot.slane %v20, %v135
  %v137 = vmul.f32 %v56, %v136
  %v138 = vmul.f32 %v61, %v136
  %v139 = vmul.f32 %v66, %v136
  %v140 = vmul.f32 %v71, %v136
  %v141 = vmul.f32 %v76, %v136
  %v142 = vmul.f32 %v81, %v136
  %v143 = vmul.f32 %v86, %v136
  %v144 = vmul.f32 %v91, %v136
  %v145 = vmul.f32 %v96, %v136
  %v146 = vmul.f32 %v101, %v136
  %v147 = vmul.f32 %v106, %v136
  %v148 = vmul.f32 %v111, %v136
  %v149 = vmul.f32 %v116, %v136
  %v150 = vmul.f32 %v121, %v136
  %v151 = vmul.f32 %v126, %v136
  %v152 = vmul.f32 %v131, %v136
  %154 = vset.pattern.permute.xlu0 0
  %155 = vperm.xlu0 %154, %v37
  %v156 = vpop.permute.xlu0 %155
  %159 = vset.pattern.permute.xlu0 0
  %160 = vperm.xlu0 %159, %v38
  %v161 = vpop.permute.xlu0 %160
  %164 = vset.pattern.permute.xlu0 0
  %165 = vperm.xlu0 %164, %v39
  %v166 = vpop.permute.xlu0 %165
  %169 = vset.pattern.permute.xlu0 0
  %170 = vperm.xlu0 %169, %v40
  %v171 = vpop.permute.xlu0 %170
  %174 = vset.pattern.permute.xlu0 0
  %175 = vperm.xlu0 %174, %v41
  %v176 = vpop.permute.xlu0 %175
  %179 = vset.pattern.permute.xlu0 0
  %180 = vperm.xlu0 %179, %v42
  %v181 = vpop.permute.xlu0 %180
  %184 = vset.pattern.permute.xlu0 0
  %185 = vperm.xlu0 %184, %v43
  %v186 = vpop.permute.xlu0 %185
  %189 = vset.pattern.permute.xlu0 0
  %190 = vperm.xlu0 %189, %v44
  %v191 = vpop.permute.xlu0 %190
  %194 = vset.pattern.permute.xlu0 0
  %195 = vperm.xlu0 %194, %v45
  %v196 = vpop.permute.xlu0 %195
  %199 = vset.pattern.permute.xlu0 0
  %200 = vperm.xlu0 %199, %v46
  %v201 = vpop.permute.xlu0 %200
  %204 = vset.pattern.permute.xlu0 0
  %205 = vperm.xlu0 %204, %v47
  %v206 = vpop.permute.xlu0 %205
  %209 = vset.pattern.permute.xlu0 0
  %210 = vperm.xlu0 %209, %v48
  %v211 = vpop.permute.xlu0 %210
  %214 = vset.pattern.permute.xlu0 0
  %215 = vperm.xlu0 %214, %v49
  %v216 = vpop.permute.xlu0 %215
  %219 = vset.pattern.permute.xlu0 0
  %220 = vperm.xlu0 %219, %v50
  %v221 = vpop.permute.xlu0 %220
  %224 = vset.pattern.permute.xlu0 0
  %225 = vperm.xlu0 %224, %v51
  %v226 = vpop.permute.xlu0 %225
  %229 = vset.pattern.permute.xlu0 0
  %230 = vperm.xlu0 %229, %v52
  %v231 = vpop.permute.xlu0 %230
  %v233 = vadd.f32 %v156, %v137
  %v234 = vadd.f32 %v161, %v138
  %v235 = vadd.f32 %v166, %v139
  %v236 = vadd.f32 %v171, %v140
  %v237 = vadd.f32 %v176, %v141
  %v238 = vadd.f32 %v181, %v142
  %v239 = vadd.f32 %v186, %v143
  %v240 = vadd.f32 %v191, %v144
  %v241 = vadd.f32 %v196, %v145
  %v242 = vadd.f32 %v201, %v146
  %v243 = vadd.f32 %v206, %v147
  %v244 = vadd.f32 %v211, %v148
  %v245 = vadd.f32 %v216, %v149
  %v246 = vadd.f32 %v221, %v150
  %v247 = vadd.f32 %v226, %v151
  %v248 = vadd.f32 %v231, %v152
  %249 = vset.pattern.permute.xlu0 1
  %250 = vperm.xlu0 %249, %v21
  %v251 = vpop.permute.xlu0 %250
  %253 = vset.pattern.permute.xlu0 1
  %254 = vperm.xlu0 %253, %v22
  %v255 = vpop.permute.xlu0 %254
  %257 = vset.pattern.permute.xlu0 1
  %258 = vperm.xlu0 %257, %v23
  %v259 = vpop.permute.xlu0 %258
  %261 = vset.pattern.permute.xlu0 1
  %262 = vperm.xlu0 %261, %v24
  %v263 = vpop.permute.xlu0 %262
  %265 = vset.pattern.permute.xlu0 1
  %266 = vperm.xlu0 %265, %v25
  %v267 = vpop.permute.xlu0 %266
  %269 = vset.pattern.permute.xlu0 1
  %270 = vperm.xlu0 %269, %v26
  %v271 = vpop.permute.xlu0 %270
  %273 = vset.pattern.permute.xlu0 1
  %274 = vperm.xlu0 %273, %v27
  %v275 = vpop.permute.xlu0 %274
  %277 = vset.pattern.permute.xlu0 1
  %278 = vperm.xlu0 %277, %v28
  %v279 = vpop.permute.xlu0 %278
  %281 = vset.pattern.permute.xlu0 1
  %282 = vperm.xlu0 %281, %v29
  %v283 = vpop.permute.xlu0 %282
  %285 = vset.pattern.permute.xlu0 1
  %286 = vperm.xlu0 %285, %v30
  %v287 = vpop.permute.xlu0 %286
  %289 = vset.pattern.permute.xlu0 1
  %290 = vperm.xlu0 %289, %v31
  %v291 = vpop.permute.xlu0 %290
  %293 = vset.pattern.permute.xlu0 1
  %294 = vperm.xlu0 %293, %v32
  %v295 = vpop.permute.xlu0 %294
  %297 = vset.pattern.permute.xlu0 1
  %298 = vperm.xlu0 %297, %v33
  %v299 = vpop.permute.xlu0 %298
  %301 = vset.pattern.permute.xlu0 1
  %302 = vperm.xlu0 %301, %v34
  %v303 = vpop.permute.xlu0 %302
  %305 = vset.pattern.permute.xlu0 1
  %306 = vperm.xlu0 %305, %v35
  %v307 = vpop.permute.xlu0 %306
  %309 = vset.pattern.permute.xlu0 1
  %310 = vperm.xlu0 %309, %v36
  %v311 = vpop.permute.xlu0 %310
  %v313 = vlaneseq
  %v314 = vshrl.u32 %v313, 7
  %v315 = vsub.s32 1, %v314
  %v316 = vrot.slane %v20, %v315
  %v317 = vmul.f32 %v251, %v316
  %v318 = vmul.f32 %v255, %v316
  %v319 = vmul.f32 %v259, %v316
  %v320 = vmul.f32 %v263, %v316
  %v321 = vmul.f32 %v267, %v316
  %v322 = vmul.f32 %v271, %v316
  %v323 = vmul.f32 %v275, %v316
  %v324 = vmul.f32 %v279, %v316
  %v325 = vmul.f32 %v283, %v316
  %v326 = vmul.f32 %v287, %v316
  %v327 = vmul.f32 %v291, %v316
  %v328 = vmul.f32 %v295, %v316
  %v329 = vmul.f32 %v299, %v316
  %v330 = vmul.f32 %v303, %v316
  %v331 = vmul.f32 %v307, %v316
  %v332 = vmul.f32 %v311, %v316
  %v333 = vadd.f32 %v233, %v317
  %v334 = vadd.f32 %v234, %v318
  %v335 = vadd.f32 %v235, %v319
  %v336 = vadd.f32 %v236, %v320
  %v337 = vadd.f32 %v237, %v321
  %v338 = vadd.f32 %v238, %v322
  %v339 = vadd.f32 %v239, %v323
  %v340 = vadd.f32 %v240, %v324
  %v341 = vadd.f32 %v241, %v325
  %v342 = vadd.f32 %v242, %v326
  %v343 = vadd.f32 %v243, %v327
  %v344 = vadd.f32 %v244, %v328
  %v345 = vadd.f32 %v245, %v329
  %v346 = vadd.f32 %v246, %v330
  %v347 = vadd.f32 %v247, %v331
  %v348 = vadd.f32 %v248, %v332
  %349 = vset.pattern.permute.xlu0 2
  %350 = vperm.xlu0 %349, %v21
  %v351 = vpop.permute.xlu0 %350
  %353 = vset.pattern.permute.xlu0 2
  %354 = vperm.xlu0 %353, %v22
  %v355 = vpop.permute.xlu0 %354
  %357 = vset.pattern.permute.xlu0 2
  %358 = vperm.xlu0 %357, %v23
  %v359 = vpop.permute.xlu0 %358
  %361 = vset.pattern.permute.xlu0 2
  %362 = vperm.xlu0 %361, %v24
  %v363 = vpop.permute.xlu0 %362
  %365 = vset.pattern.permute.xlu0 2
  %366 = vperm.xlu0 %365, %v25
  %v367 = vpop.permute.xlu0 %366
  %369 = vset.pattern.permute.xlu0 2
  %370 = vperm.xlu0 %369, %v26
  %v371 = vpop.permute.xlu0 %370
  %373 = vset.pattern.permute.xlu0 2
  %374 = vperm.xlu0 %373, %v27
  %v375 = vpop.permute.xlu0 %374
  %377 = vset.pattern.permute.xlu0 2
  %378 = vperm.xlu0 %377, %v28
  %v379 = vpop.permute.xlu0 %378
  %381 = vset.pattern.permute.xlu0 2
  %382 = vperm.xlu0 %381, %v29
  %v383 = vpop.permute.xlu0 %382
  %385 = vset.pattern.permute.xlu0 2
  %386 = vperm.xlu0 %385, %v30
  %v387 = vpop.permute.xlu0 %386
  %389 = vset.pattern.permute.xlu0 2
  %390 = vperm.xlu0 %389, %v31
  %v391 = vpop.permute.xlu0 %390
  %393 = vset.pattern.permute.xlu0 2
  %394 = vperm.xlu0 %393, %v32
  %v395 = vpop.permute.xlu0 %394
  %397 = vset.pattern.permute.xlu0 2
  %398 = vperm.xlu0 %397, %v33
  %v399 = vpop.permute.xlu0 %398
  %401 = vset.pattern.permute.xlu0 2
  %402 = vperm.xlu0 %401, %v34
  %v403 = vpop.permute.xlu0 %402
  %405 = vset.pattern.permute.xlu0 2
  %406 = vperm.xlu0 %405, %v35
  %v407 = vpop.permute.xlu0 %406
  %409 = vset.pattern.permute.xlu0 2
  %410 = vperm.xlu0 %409, %v36
  %v411 = vpop.permute.xlu0 %410
  %v413 = vlaneseq
  %v414 = vshrl.u32 %v413, 7
  %v415 = vsub.s32 2, %v414
  %v416 = vrot.slane %v20, %v415
  %v417 = vmul.f32 %v351, %v416
  %v418 = vmul.f32 %v355, %v416
  %v419 = vmul.f32 %v359, %v416
  %v420 = vmul.f32 %v363, %v416
  %v421 = vmul.f32 %v367, %v416
  %v422 = vmul.f32 %v371, %v416
  %v423 = vmul.f32 %v375, %v416
  %v424 = vmul.f32 %v379, %v416
  %v425 = vmul.f32 %v383, %v416
  %v426 = vmul.f32 %v387, %v416
  %v427 = vmul.f32 %v391, %v416
  %v428 = vmul.f32 %v395, %v416
  %v429 = vmul.f32 %v399, %v416
  %v430 = vmul.f32 %v403, %v416
  %v431 = vmul.f32 %v407, %v416
  %v432 = vmul.f32 %v411, %v416
  %v433 = vadd.f32 %v333, %v417
  %v434 = vadd.f32 %v334, %v418
  %v435 = vadd.f32 %v335, %v419
  %v436 = vadd.f32 %v336, %v420
  %v437 = vadd.f32 %v337, %v421
  %v438 = vadd.f32 %v338, %v422
  %v439 = vadd.f32 %v339, %v423
  %v440 = vadd.f32 %v340, %v424
  %v441 = vadd.f32 %v341, %v425
  %v442 = vadd.f32 %v342, %v426
  %v443 = vadd.f32 %v343, %v427
  %v444 = vadd.f32 %v344, %v428
  %v445 = vadd.f32 %v345, %v429
  %v446 = vadd.f32 %v346, %v430
  %v447 = vadd.f32 %v347, %v431
  %v448 = vadd.f32 %v348, %v432
  %449 = vset.pattern.permute.xlu0 3
  %450 = vperm.xlu0 %449, %v21
  %v451 = vpop.permute.xlu0 %450
  %453 = vset.pattern.permute.xlu0 3
  %454 = vperm.xlu0 %453, %v22
  %v455 = vpop.permute.xlu0 %454
  %457 = vset.pattern.permute.xlu0 3
  %458 = vperm.xlu0 %457, %v23
  %v459 = vpop.permute.xlu0 %458
  %461 = vset.pattern.permute.xlu0 3
  %462 = vperm.xlu0 %461, %v24
  %v463 = vpop.permute.xlu0 %462
  %465 = vset.pattern.permute.xlu0 3
  %466 = vperm.xlu0 %465, %v25
  %v467 = vpop.permute.xlu0 %466
  %469 = vset.pattern.permute.xlu0 3
  %470 = vperm.xlu0 %469, %v26
  %v471 = vpop.permute.xlu0 %470
  %473 = vset.pattern.permute.xlu0 3
  %474 = vperm.xlu0 %473, %v27
  %v475 = vpop.permute.xlu0 %474
  %477 = vset.pattern.permute.xlu0 3
  %478 = vperm.xlu0 %477, %v28
  %v479 = vpop.permute.xlu0 %478
  %481 = vset.pattern.permute.xlu0 3
  %482 = vperm.xlu0 %481, %v29
  %v483 = vpop.permute.xlu0 %482
  %485 = vset.pattern.permute.xlu0 3
  %486 = vperm.xlu0 %485, %v30
  %v487 = vpop.permute.xlu0 %486
  %489 = vset.pattern.permute.xlu0 3
  %490 = vperm.xlu0 %489, %v31
  %v491 = vpop.permute.xlu0 %490
  %493 = vset.pattern.permute.xlu0 3
  %494 = vperm.xlu0 %493, %v32
  %v495 = vpop.permute.xlu0 %494
  %497 = vset.pattern.permute.xlu0 3
  %498 = vperm.xlu0 %497, %v33
  %v499 = vpop.permute.xlu0 %498
  %501 = vset.pattern.permute.xlu0 3
  %502 = vperm.xlu0 %501, %v34
  %v503 = vpop.permute.xlu0 %502
  %505 = vset.pattern.permute.xlu0 3
  %506 = vperm.xlu0 %505, %v35
  %v507 = vpop.permute.xlu0 %506
  %509 = vset.pattern.permute.xlu0 3
  %510 = vperm.xlu0 %509, %v36
  %v511 = vpop.permute.xlu0 %510
  %v513 = vlaneseq
  %v514 = vshrl.u32 %v513, 7
  %v515 = vsub.s32 3, %v514
  %v516 = vrot.slane %v20, %v515
  %v517 = vmul.f32 %v451, %v516
  %v518 = vmul.f32 %v455, %v516
  %v519 = vmul.f32 %v459, %v516
  %v520 = vmul.f32 %v463, %v516
  %v521 = vmul.f32 %v467, %v516
  %v522 = vmul.f32 %v471, %v516
  %v523 = vmul.f32 %v475, %v516
  %v524 = vmul.f32 %v479, %v516
  %v525 = vmul.f32 %v483, %v516
  %v526 = vmul.f32 %v487, %v516
  %v527 = vmul.f32 %v491, %v516
  %v528 = vmul.f32 %v495, %v516
  %v529 = vmul.f32 %v499, %v516
  %v530 = vmul.f32 %v503, %v516
  %v531 = vmul.f32 %v507, %v516
  %v532 = vmul.f32 %v511, %v516
  %v533 = vadd.f32 %v433, %v517
  %v534 = vadd.f32 %v434, %v518
  %v535 = vadd.f32 %v435, %v519
  %v536 = vadd.f32 %v436, %v520
  %v537 = vadd.f32 %v437, %v521
  %v538 = vadd.f32 %v438, %v522
  %v539 = vadd.f32 %v439, %v523
  %v540 = vadd.f32 %v440, %v524
  %v541 = vadd.f32 %v441, %v525
  %v542 = vadd.f32 %v442, %v526
  %v543 = vadd.f32 %v443, %v527
  %v544 = vadd.f32 %v444, %v528
  %v545 = vadd.f32 %v445, %v529
  %v546 = vadd.f32 %v446, %v530
  %v547 = vadd.f32 %v447, %v531
  %v548 = vadd.f32 %v448, %v532
  %v549 = vmax.f32 %v533, 0.0
  %v550 = vmax.f32 %v534, 0.0
  %v551 = vmax.f32 %v535, 0.0
  %v552 = vmax.f32 %v536, 0.0
  %v553 = vmax.f32 %v537, 0.0
  %v554 = vmax.f32 %v538, 0.0
  %v555 = vmax.f32 %v539, 0.0
  %v556 = vmax.f32 %v540, 0.0
  %v557 = vmax.f32 %v541, 0.0
  %v558 = vmax.f32 %v542, 0.0
  %v559 = vmax.f32 %v543, 0.0
  %v560 = vmax.f32 %v544, 0.0
  %v561 = vmax.f32 %v545, 0.0
  %v562 = vmax.f32 %v546, 0.0
  %v563 = vmax.f32 %v547, 0.0
  %v564 = vmax.f32 %v548, 0.0
  %v565 = vld [vmem:[%s3] sm:$0xff]
  %v566 = vld [vmem:[%s4] sm:$0xff]
  %568 = vset.pattern.permute.xlu0 0
  %569 = vperm.xlu0 %568, %v566
  %v570 = vpop.permute.xlu0 %569
  %572 = vmatprep.subr.mxu0 0.0
  %v573 = vand.u32 %v564, 4294901760
  %574 = vmatpush1.msra.mxu0 %v573
  %575 = vmatprep.subr.mxu0 0.0
  %v576 = vand.u32 %v563, 4294901760
  %577 = vmatpush1.msra.mxu0 %v576
  %578 = vmatprep.subr.mxu0 0.0
  %v579 = vand.u32 %v562, 4294901760
  %580 = vmatpush1.msra.mxu0 %v579
  %581 = vmatprep.subr.mxu0 0.0
  %v582 = vand.u32 %v561, 4294901760
  %583 = vmatpush1.msra.mxu0 %v582
  %584 = vmatprep.subr.mxu0 0.0
  %v585 = vand.u32 %v560, 4294901760
  %586 = vmatpush1.msra.mxu0 %v585
  %587 = vmatprep.subr.mxu0 0.0
  %v588 = vand.u32 %v559, 4294901760
  %589 = vmatpush1.msra.mxu0 %v588
  %590 = vmatprep.subr.mxu0 0.0
  %v591 = vand.u32 %v558, 4294901760
  %592 = vmatpush1.msra.mxu0 %v591
  %593 = vmatprep.subr.mxu0 0.0
  %v594 = vand.u32 %v557, 4294901760
  %595 = vmatpush1.msra.mxu0 %v594
  %596 = vmatprep.subr.mxu0 0.0
  %v597 = vand.u32 %v556, 4294901760
  %598 = vmatpush1.msra.mxu0 %v597
  %599 = vmatprep.subr.mxu0 0.0
  %v600 = vand.u32 %v555, 4294901760
  %601 = vmatpush1.msra.mxu0 %v600
  %602 = vmatprep.subr.mxu0 0.0
  %v603 = vand.u32 %v554, 4294901760
  %604 = vmatpush1.msra.mxu0 %v603
  %605 = vmatprep.subr.mxu0 0.0
  %v606 = vand.u32 %v553, 4294901760
  %607 = vmatpush1.msra.mxu0 %v606
  %608 = vmatprep.subr.mxu0 0.0
  %v609 = vand.u32 %v552, 4294901760
  %610 = vmatpush1.msra.mxu0 %v609
  %611 = vmatprep.subr.mxu0 0.0
  %v612 = vand.u32 %v551, 4294901760
  %613 = vmatpush1.msra.mxu0 %v612
  %614 = vmatprep.subr.mxu0 0.0
  %v615 = vand.u32 %v550, 4294901760
  %616 = vmatpush1.msra.mxu0 %v615
  %617 = vmatprep.subr.mxu0 0.0
  %v618 = vand.u32 %v549, 4294901760
  %619 = vmatpush1.msra.mxu0 %v618
  %620 = vmatprep.subr.mxu0 0.0
  %621 = vmatpush2.msra.mxu0 0.0
  %622 = vmatprep.subr.mxu0 0.0
  %623 = vmatpush2.msra.mxu0 0.0
  %624 = vmatprep.subr.mxu0 0.0
  %625 = vmatpush2.msra.mxu0 0.0
  %626 = vmatprep.subr.mxu0 0.0
  %627 = vmatpush2.msra.mxu0 0.0
  %628 = vmatprep.subr.mxu0 0.0
  %629 = vmatpush2.msra.mxu0 0.0
  %630 = vmatprep.subr.mxu0 0.0
  %631 = vmatpush2.msra.mxu0 0.0
  %632 = vmatprep.subr.mxu0 0.0
  %633 = vmatpush2.msra.mxu0 0.0
  %634 = vmatprep.subr.mxu0 0.0
  %635 = vmatpush2.msra.mxu0 0.0
  %636 = vmatprep.subr.mxu0 0.0
  %637 = vmatpush2.msra.mxu0 0.0
  %638 = vmatprep.subr.mxu0 0.0
  %639 = vmatpush2.msra.mxu0 0.0
  %640 = vmatprep.subr.mxu0 0.0
  %641 = vmatpush2.msra.mxu0 0.0
  %642 = vmatprep.subr.mxu0 0.0
  %643 = vmatpush2.msra.mxu0 0.0
  %644 = vmatprep.subr.mxu0 0.0
  %645 = vmatpush2.msra.mxu0 0.0
  %646 = vmatprep.subr.mxu0 0.0
  %647 = vmatpush2.msra.mxu0 0.0
  %648 = vmatprep.subr.mxu0 0.0
  %649 = vmatpush2.msra.mxu0 0.0
  %650 = vmatprep.subr.mxu0 0.0
  %651 = vmatpush2.msra.mxu0 0.0
  %652 = vmatprep.mubr.f32.mxu0 0.0
  %v653 = vand.u32 %v565, 4294901760
  %v654 = vsub.f32 %v565, %v653
  %v655 = vand.u32 %v654, 4294901760
  %v656 = vsub.f32 %v654, %v655
  %v657 = vand.u32 %v656, 4294901760
  %658 = vmatmul.mubr.f32.gmra.mxu0 %v657
  %v659 = vpop.f32.mrf.mxu0
  %v660 = vadd.f32 %v570, %v659
  %v661 = vpop.f32.mrf.mxu0
  %662 = vdwg.mxu0
  %663 = vmatprep.subr.mxu0 0.0
  %v664 = vand.u32 %v564, 4294901760
  %v665 = vsub.f32 %v564, %v664
  %v666 = vand.u32 %v665, 4294901760
  %v667 = vsub.f32 %v665, %v666
  %v668 = vand.u32 %v667, 4294901760
  %669 = vmatpush1.msra.mxu0 %v668
  %670 = vmatprep.subr.mxu0 0.0
  %v671 = vand.u32 %v563, 4294901760
  %v672 = vsub.f32 %v563, %v671
  %v673 = vand.u32 %v672, 4294901760
  %v674 = vsub.f32 %v672, %v673
  %v675 = vand.u32 %v674, 4294901760
  %676 = vmatpush1.msra.mxu0 %v675
  %677 = vmatprep.subr.mxu0 0.0
  %v678 = vand.u32 %v562, 4294901760
  %v679 = vsub.f32 %v562, %v678
  %v680 = vand.u32 %v679, 4294901760
  %v681 = vsub.f32 %v679, %v680
  %v682 = vand.u32 %v681, 4294901760
  %683 = vmatpush1.msra.mxu0 %v682
  %684 = vmatprep.subr.mxu0 0.0
  %v685 = vand.u32 %v561, 4294901760
  %v686 = vsub.f32 %v561, %v685
  %v687 = vand.u32 %v686, 4294901760
  %v688 = vsub.f32 %v686, %v687
  %v689 = vand.u32 %v688, 4294901760
  %690 = vmatpush1.msra.mxu0 %v689
  %691 = vmatprep.subr.mxu0 0.0
  %v692 = vand.u32 %v560, 4294901760
  %v693 = vsub.f32 %v560, %v692
  %v694 = vand.u32 %v693, 4294901760
  %v695 = vsub.f32 %v693, %v694
  %v696 = vand.u32 %v695, 4294901760
  %697 = vmatpush1.msra.mxu0 %v696
  %698 = vmatprep.subr.mxu0 0.0
  %v699 = vand.u32 %v559, 4294901760
  %v700 = vsub.f32 %v559, %v699
  %v701 = vand.u32 %v700, 4294901760
  %v702 = vsub.f32 %v700, %v701
  %v703 = vand.u32 %v702, 4294901760
  %704 = vmatpush1.msra.mxu0 %v703
  %705 = vmatprep.subr.mxu0 0.0
  %v706 = vand.u32 %v558, 4294901760
  %v707 = vsub.f32 %v558, %v706
  %v708 = vand.u32 %v707, 4294901760
  %v709 = vsub.f32 %v707, %v708
  %v710 = vand.u32 %v709, 4294901760
  %711 = vmatpush1.msra.mxu0 %v710
  %712 = vmatprep.subr.mxu0 0.0
  %v713 = vand.u32 %v557, 4294901760
  %v714 = vsub.f32 %v557, %v713
  %v715 = vand.u32 %v714, 4294901760
  %v716 = vsub.f32 %v714, %v715
  %v717 = vand.u32 %v716, 4294901760
  %718 = vmatpush1.msra.mxu0 %v717
  %719 = vmatprep.subr.mxu0 0.0
  %v720 = vand.u32 %v556, 4294901760
  %v721 = vsub.f32 %v556, %v720
  %v722 = vand.u32 %v721, 4294901760
  %v723 = vsub.f32 %v721, %v722
  %v724 = vand.u32 %v723, 4294901760
  %725 = vmatpush1.msra.mxu0 %v724
  %726 = vmatprep.subr.mxu0 0.0
  %v727 = vand.u32 %v555, 4294901760
  %v728 = vsub.f32 %v555, %v727
  %v729 = vand.u32 %v728, 4294901760
  %v730 = vsub.f32 %v728, %v729
  %v731 = vand.u32 %v730, 4294901760
  %732 = vmatpush1.msra.mxu0 %v731
  %733 = vmatprep.subr.mxu0 0.0
  %v734 = vand.u32 %v554, 4294901760
  %v735 = vsub.f32 %v554, %v734
  %v736 = vand.u32 %v735, 4294901760
  %v737 = vsub.f32 %v735, %v736
  %v738 = vand.u32 %v737, 4294901760
  %739 = vmatpush1.msra.mxu0 %v738
  %740 = vmatprep.subr.mxu0 0.0
  %v741 = vand.u32 %v553, 4294901760
  %v742 = vsub.f32 %v553, %v741
  %v743 = vand.u32 %v742, 4294901760
  %v744 = vsub.f32 %v742, %v743
  %v745 = vand.u32 %v744, 4294901760
  %746 = vmatpush1.msra.mxu0 %v745
  %747 = vmatprep.subr.mxu0 0.0
  %v748 = vand.u32 %v552, 4294901760
  %v749 = vsub.f32 %v552, %v748
  %v750 = vand.u32 %v749, 4294901760
  %v751 = vsub.f32 %v749, %v750
  %v752 = vand.u32 %v751, 4294901760
  %753 = vmatpush1.msra.mxu0 %v752
  %754 = vmatprep.subr.mxu0 0.0
  %v755 = vand.u32 %v551, 4294901760
  %v756 = vsub.f32 %v551, %v755
  %v757 = vand.u32 %v756, 4294901760
  %v758 = vsub.f32 %v756, %v757
  %v759 = vand.u32 %v758, 4294901760
  %760 = vmatpush1.msra.mxu0 %v759
  %761 = vmatprep.subr.mxu0 0.0
  %v762 = vand.u32 %v550, 4294901760
  %v763 = vsub.f32 %v550, %v762
  %v764 = vand.u32 %v763, 4294901760
  %v765 = vsub.f32 %v763, %v764
  %v766 = vand.u32 %v765, 4294901760
  %767 = vmatpush1.msra.mxu0 %v766
  %768 = vmatprep.subr.mxu0 0.0
  %v769 = vand.u32 %v549, 4294901760
  %v770 = vsub.f32 %v549, %v769
  %v771 = vand.u32 %v770, 4294901760
  %v772 = vsub.f32 %v770, %v771
  %v773 = vand.u32 %v772, 4294901760
  %774 = vmatpush1.msra.mxu0 %v773
  %775 = vmatprep.subr.mxu0 0.0
  %776 = vmatpush2.msra.mxu0 0.0
  %777 = vmatprep.subr.mxu0 0.0
  %778 = vmatpush2.msra.mxu0 0.0
  %779 = vmatprep.subr.mxu0 0.0
  %780 = vmatpush2.msra.mxu0 0.0
  %781 = vmatprep.subr.mxu0 0.0
  %782 = vmatpush2.msra.mxu0 0.0
  %783 = vmatprep.subr.mxu0 0.0
  %784 = vmatpush2.msra.mxu0 0.0
  %785 = vmatprep.subr.mxu0 0.0
  %786 = vmatpush2.msra.mxu0 0.0
  %787 = vmatprep.subr.mxu0 0.0
  %788 = vmatpush2.msra.mxu0 0.0
  %789 = vmatprep.subr.mxu0 0.0
  %790 = vmatpush2.msra.mxu0 0.0
  %791 = vmatprep.subr.mxu0 0.0
  %792 = vmatpush2.msra.mxu0 0.0
  %793 = vmatprep.subr.mxu0 0.0
  %794 = vmatpush2.msra.mxu0 0.0
  %795 = vmatprep.subr.mxu0 0.0
  %796 = vmatpush2.msra.mxu0 0.0
  %797 = vmatprep.subr.mxu0 0.0
  %798 = vmatpush2.msra.mxu0 0.0
  %799 = vmatprep.subr.mxu0 0.0
  %800 = vmatpush2.msra.mxu0 0.0
  %801 = vmatprep.subr.mxu0 0.0
  %802 = vmatpush2.msra.mxu0 0.0
  %803 = vmatprep.subr.mxu0 0.0
  %804 = vmatpush2.msra.mxu0 0.0
  %805 = vmatprep.subr.mxu0 0.0
  %806 = vmatpush2.msra.mxu0 0.0
  %807 = vmatprep.mubr.f32.mxu0 0.0
  %v808 = vand.u32 %v565, 4294901760
  %809 = vmatmul.mubr.f32.gmra.mxu0 %v808
  %v810 = vpop.f32.mrf.mxu0
  %v811 = vadd.f32 %v660, %v810
  %v812 = vpop.f32.mrf.mxu0
  %813 = vdwg.mxu0
  %814 = vmatprep.subr.mxu0 0.0
  %v815 = vand.u32 %v564, 4294901760
  %v816 = vsub.f32 %v564, %v815
  %817 = vmatpush1.msra.mxu0 %v816
  %818 = vmatprep.subr.mxu0 0.0
  %v819 = vand.u32 %v563, 4294901760
  %v820 = vsub.f32 %v563, %v819
  %821 = vmatpush1.msra.mxu0 %v820
  %822 = vmatprep.subr.mxu0 0.0
  %v823 = vand.u32 %v562, 4294901760
  %v824 = vsub.f32 %v562, %v823
  %825 = vmatpush1.msra.mxu0 %v824
  %826 = vmatprep.subr.mxu0 0.0
  %v827 = vand.u32 %v561, 4294901760
  %v828 = vsub.f32 %v561, %v827
  %829 = vmatpush1.msra.mxu0 %v828
  %830 = vmatprep.subr.mxu0 0.0
  %v831 = vand.u32 %v560, 4294901760
  %v832 = vsub.f32 %v560, %v831
  %833 = vmatpush1.msra.mxu0 %v832
  %834 = vmatprep.subr.mxu0 0.0
  %v835 = vand.u32 %v559, 4294901760
  %v836 = vsub.f32 %v559, %v835
  %837 = vmatpush1.msra.mxu0 %v836
  %838 = vmatprep.subr.mxu0 0.0
  %v839 = vand.u32 %v558, 4294901760
  %v840 = vsub.f32 %v558, %v839
  %841 = vmatpush1.msra.mxu0 %v840
  %842 = vmatprep.subr.mxu0 0.0
  %v843 = vand.u32 %v557, 4294901760
  %v844 = vsub.f32 %v557, %v843
  %845 = vmatpush1.msra.mxu0 %v844
  %846 = vmatprep.subr.mxu0 0.0
  %v847 = vand.u32 %v556, 4294901760
  %v848 = vsub.f32 %v556, %v847
  %849 = vmatpush1.msra.mxu0 %v848
  %850 = vmatprep.subr.mxu0 0.0
  %v851 = vand.u32 %v555, 4294901760
  %v852 = vsub.f32 %v555, %v851
  %853 = vmatpush1.msra.mxu0 %v852
  %854 = vmatprep.subr.mxu0 0.0
  %v855 = vand.u32 %v554, 4294901760
  %v856 = vsub.f32 %v554, %v855
  %857 = vmatpush1.msra.mxu0 %v856
  %858 = vmatprep.subr.mxu0 0.0
  %v859 = vand.u32 %v553, 4294901760
  %v860 = vsub.f32 %v553, %v859
  %861 = vmatpush1.msra.mxu0 %v860
  %862 = vmatprep.subr.mxu0 0.0
  %v863 = vand.u32 %v552, 4294901760
  %v864 = vsub.f32 %v552, %v863
  %865 = vmatpush1.msra.mxu0 %v864
  %866 = vmatprep.subr.mxu0 0.0
  %v867 = vand.u32 %v551, 4294901760
  %v868 = vsub.f32 %v551, %v867
  %869 = vmatpush1.msra.mxu0 %v868
  %870 = vmatprep.subr.mxu0 0.0
  %v871 = vand.u32 %v550, 4294901760
  %v872 = vsub.f32 %v550, %v871
  %873 = vmatpush1.msra.mxu0 %v872
  %874 = vmatprep.subr.mxu0 0.0
  %v875 = vand.u32 %v549, 4294901760
  %v876 = vsub.f32 %v549, %v875
  %877 = vmatpush1.msra.mxu0 %v876
  %878 = vmatprep.subr.mxu0 0.0
  %879 = vmatpush2.msra.mxu0 0.0
  %880 = vmatprep.subr.mxu0 0.0
  %881 = vmatpush2.msra.mxu0 0.0
  %882 = vmatprep.subr.mxu0 0.0
  %883 = vmatpush2.msra.mxu0 0.0
  %884 = vmatprep.subr.mxu0 0.0
  %885 = vmatpush2.msra.mxu0 0.0
  %886 = vmatprep.subr.mxu0 0.0
  %887 = vmatpush2.msra.mxu0 0.0
  %888 = vmatprep.subr.mxu0 0.0
  %889 = vmatpush2.msra.mxu0 0.0
  %890 = vmatprep.subr.mxu0 0.0
  %891 = vmatpush2.msra.mxu0 0.0
  %892 = vmatprep.subr.mxu0 0.0
  %893 = vmatpush2.msra.mxu0 0.0
  %894 = vmatprep.subr.mxu0 0.0
  %895 = vmatpush2.msra.mxu0 0.0
  %896 = vmatprep.subr.mxu0 0.0
  %897 = vmatpush2.msra.mxu0 0.0
  %898 = vmatprep.subr.mxu0 0.0
  %899 = vmatpush2.msra.mxu0 0.0
  %900 = vmatprep.subr.mxu0 0.0
  %901 = vmatpush2.msra.mxu0 0.0
  %902 = vmatprep.subr.mxu0 0.0
  %903 = vmatpush2.msra.mxu0 0.0
  %904 = vmatprep.subr.mxu0 0.0
  %905 = vmatpush2.msra.mxu0 0.0
  %906 = vmatprep.subr.mxu0 0.0
  %907 = vmatpush2.msra.mxu0 0.0
  %908 = vmatprep.subr.mxu0 0.0
  %909 = vmatpush2.msra.mxu0 0.0
  %910 = vmatprep.mubr.f32.mxu0 0.0
  %v911 = vand.u32 %v565, 4294901760
  %v912 = vsub.f32 %v565, %v911
  %913 = vmatmul.mubr.f32.gmra.mxu0 %v912
  %v914 = vpop.f32.mrf.mxu0
  %v915 = vadd.f32 %v811, %v914
  %v916 = vpop.f32.mrf.mxu0
  %917 = vdwg.mxu0
  %918 = vmatprep.subr.mxu0 0.0
  %v919 = vand.u32 %v564, 4294901760
  %920 = vmatpush1.msra.mxu0 %v919
  %921 = vmatprep.subr.mxu0 0.0
  %v922 = vand.u32 %v563, 4294901760
  %923 = vmatpush1.msra.mxu0 %v922
  %924 = vmatprep.subr.mxu0 0.0
  %v925 = vand.u32 %v562, 4294901760
  %926 = vmatpush1.msra.mxu0 %v925
  %927 = vmatprep.subr.mxu0 0.0
  %v928 = vand.u32 %v561, 4294901760
  %929 = vmatpush1.msra.mxu0 %v928
  %930 = vmatprep.subr.mxu0 0.0
  %v931 = vand.u32 %v560, 4294901760
  %932 = vmatpush1.msra.mxu0 %v931
  %933 = vmatprep.subr.mxu0 0.0
  %v934 = vand.u32 %v559, 4294901760
  %935 = vmatpush1.msra.mxu0 %v934
  %936 = vmatprep.subr.mxu0 0.0
  %v937 = vand.u32 %v558, 4294901760
  %938 = vmatpush1.msra.mxu0 %v937
  %939 = vmatprep.subr.mxu0 0.0
  %v940 = vand.u32 %v557, 4294901760
  %941 = vmatpush1.msra.mxu0 %v940
  %942 = vmatprep.subr.mxu0 0.0
  %v943 = vand.u32 %v556, 4294901760
  %944 = vmatpush1.msra.mxu0 %v943
  %945 = vmatprep.subr.mxu0 0.0
  %v946 = vand.u32 %v555, 4294901760
  %947 = vmatpush1.msra.mxu0 %v946
  %948 = vmatprep.subr.mxu0 0.0
  %v949 = vand.u32 %v554, 4294901760
  %950 = vmatpush1.msra.mxu0 %v949
  %951 = vmatprep.subr.mxu0 0.0
  %v952 = vand.u32 %v553, 4294901760
  %953 = vmatpush1.msra.mxu0 %v952
  %954 = vmatprep.subr.mxu0 0.0
  %v955 = vand.u32 %v552, 4294901760
  %956 = vmatpush1.msra.mxu0 %v955
  %957 = vmatprep.subr.mxu0 0.0
  %v958 = vand.u32 %v551, 4294901760
  %959 = vmatpush1.msra.mxu0 %v958
  %960 = vmatprep.subr.mxu0 0.0
  %v961 = vand.u32 %v550, 4294901760
  %962 = vmatpush1.msra.mxu0 %v961
  %963 = vmatprep.subr.mxu0 0.0
  %v964 = vand.u32 %v549, 4294901760
  %965 = vmatpush1.msra.mxu0 %v964
  %966 = vmatprep.subr.mxu0 0.0
  %967 = vmatpush2.msra.mxu0 0.0
  %968 = vmatprep.subr.mxu0 0.0
  %969 = vmatpush2.msra.mxu0 0.0
  %970 = vmatprep.subr.mxu0 0.0
  %971 = vmatpush2.msra.mxu0 0.0
  %972 = vmatprep.subr.mxu0 0.0
  %973 = vmatpush2.msra.mxu0 0.0
  %974 = vmatprep.subr.mxu0 0.0
  %975 = vmatpush2.msra.mxu0 0.0
  %976 = vmatprep.subr.mxu0 0.0
  %977 = vmatpush2.msra.mxu0 0.0
  %978 = vmatprep.subr.mxu0 0.0
  %979 = vmatpush2.msra.mxu0 0.0
  %980 = vmatprep.subr.mxu0 0.0
  %981 = vmatpush2.msra.mxu0 0.0
  %982 = vmatprep.subr.mxu0 0.0
  %983 = vmatpush2.msra.mxu0 0.0
  %984 = vmatprep.subr.mxu0 0.0
  %985 = vmatpush2.msra.mxu0 0.0
  %986 = vmatprep.subr.mxu0 0.0
  %987 = vmatpush2.msra.mxu0 0.0
  %988 = vmatprep.subr.mxu0 0.0
  %989 = vmatpush2.msra.mxu0 0.0
  %990 = vmatprep.subr.mxu0 0.0
  %991 = vmatpush2.msra.mxu0 0.0
  %992 = vmatprep.subr.mxu0 0.0
  %993 = vmatpush2.msra.mxu0 0.0
  %994 = vmatprep.subr.mxu0 0.0
  %995 = vmatpush2.msra.mxu0 0.0
  %996 = vmatprep.subr.mxu0 0.0
  %997 = vmatpush2.msra.mxu0 0.0
  %998 = vmatprep.mubr.f32.mxu0 0.0
  %v999 = vand.u32 %v565, 4294901760
  %v1000 = vsub.f32 %v565, %v999
  %v1001 = vand.u32 %v1000, 4294901760
  %1002 = vmatmul.mubr.f32.gmra.mxu0 %v1001
  %v1003 = vpop.f32.mrf.mxu0
  %v1004 = vadd.f32 %v915, %v1003
  %v1005 = vpop.f32.mrf.mxu0
  %1006 = vdwg.mxu0
  %1007 = vmatprep.subr.mxu0 0.0
  %v1008 = vand.u32 %v564, 4294901760
  %v1009 = vsub.f32 %v564, %v1008
  %v1010 = vand.u32 %v1009, 4294901760
  %1011 = vmatpush1.msra.mxu0 %v1010
  %1012 = vmatprep.subr.mxu0 0.0
  %v1013 = vand.u32 %v563, 4294901760
  %v1014 = vsub.f32 %v563, %v1013
  %v1015 = vand.u32 %v1014, 4294901760
  %1016 = vmatpush1.msra.mxu0 %v1015
  %1017 = vmatprep.subr.mxu0 0.0
  %v1018 = vand.u32 %v562, 4294901760
  %v1019 = vsub.f32 %v562, %v1018
  %v1020 = vand.u32 %v1019, 4294901760
  %1021 = vmatpush1.msra.mxu0 %v1020
  %1022 = vmatprep.subr.mxu0 0.0
  %v1023 = vand.u32 %v561, 4294901760
  %v1024 = vsub.f32 %v561, %v1023
  %v1025 = vand.u32 %v1024, 4294901760
  %1026 = vmatpush1.msra.mxu0 %v1025
  %1027 = vmatprep.subr.mxu0 0.0
  %v1028 = vand.u32 %v560, 4294901760
  %v1029 = vsub.f32 %v560, %v1028
  %v1030 = vand.u32 %v1029, 4294901760
  %1031 = vmatpush1.msra.mxu0 %v1030
  %1032 = vmatprep.subr.mxu0 0.0
  %v1033 = vand.u32 %v559, 4294901760
  %v1034 = vsub.f32 %v559, %v1033
  %v1035 = vand.u32 %v1034, 4294901760
  %1036 = vmatpush1.msra.mxu0 %v1035
  %1037 = vmatprep.subr.mxu0 0.0
  %v1038 = vand.u32 %v558, 4294901760
  %v1039 = vsub.f32 %v558, %v1038
  %v1040 = vand.u32 %v1039, 4294901760
  %1041 = vmatpush1.msra.mxu0 %v1040
  %1042 = vmatprep.subr.mxu0 0.0
  %v1043 = vand.u32 %v557, 4294901760
  %v1044 = vsub.f32 %v557, %v1043
  %v1045 = vand.u32 %v1044, 4294901760
  %1046 = vmatpush1.msra.mxu0 %v1045
  %1047 = vmatprep.subr.mxu0 0.0
  %v1048 = vand.u32 %v556, 4294901760
  %v1049 = vsub.f32 %v556, %v1048
  %v1050 = vand.u32 %v1049, 4294901760
  %1051 = vmatpush1.msra.mxu0 %v1050
  %1052 = vmatprep.subr.mxu0 0.0
  %v1053 = vand.u32 %v555, 4294901760
  %v1054 = vsub.f32 %v555, %v1053
  %v1055 = vand.u32 %v1054, 4294901760
  %1056 = vmatpush1.msra.mxu0 %v1055
  %1057 = vmatprep.subr.mxu0 0.0
  %v1058 = vand.u32 %v554, 4294901760
  %v1059 = vsub.f32 %v554, %v1058
  %v1060 = vand.u32 %v1059, 4294901760
  %1061 = vmatpush1.msra.mxu0 %v1060
  %1062 = vmatprep.subr.mxu0 0.0
  %v1063 = vand.u32 %v553, 4294901760
  %v1064 = vsub.f32 %v553, %v1063
  %v1065 = vand.u32 %v1064, 4294901760
  %1066 = vmatpush1.msra.mxu0 %v1065
  %1067 = vmatprep.subr.mxu0 0.0
  %v1068 = vand.u32 %v552, 4294901760
  %v1069 = vsub.f32 %v552, %v1068
  %v1070 = vand.u32 %v1069, 4294901760
  %1071 = vmatpush1.msra.mxu0 %v1070
  %1072 = vmatprep.subr.mxu0 0.0
  %v1073 = vand.u32 %v551, 4294901760
  %v1074 = vsub.f32 %v551, %v1073
  %v1075 = vand.u32 %v1074, 4294901760
  %1076 = vmatpush1.msra.mxu0 %v1075
  %1077 = vmatprep.subr.mxu0 0.0
  %v1078 = vand.u32 %v550, 4294901760
  %v1079 = vsub.f32 %v550, %v1078
  %v1080 = vand.u32 %v1079, 4294901760
  %1081 = vmatpush1.msra.mxu0 %v1080
  %1082 = vmatprep.subr.mxu0 0.0
  %v1083 = vand.u32 %v549, 4294901760
  %v1084 = vsub.f32 %v549, %v1083
  %v1085 = vand.u32 %v1084, 4294901760
  %1086 = vmatpush1.msra.mxu0 %v1085
  %1087 = vmatprep.subr.mxu0 0.0
  %1088 = vmatpush2.msra.mxu0 0.0
  %1089 = vmatprep.subr.mxu0 0.0
  %1090 = vmatpush2.msra.mxu0 0.0
  %1091 = vmatprep.subr.mxu0 0.0
  %1092 = vmatpush2.msra.mxu0 0.0
  %1093 = vmatprep.subr.mxu0 0.0
  %1094 = vmatpush2.msra.mxu0 0.0
  %1095 = vmatprep.subr.mxu0 0.0
  %1096 = vmatpush2.msra.mxu0 0.0
  %1097 = vmatprep.subr.mxu0 0.0
  %1098 = vmatpush2.msra.mxu0 0.0
  %1099 = vmatprep.subr.mxu0 0.0
  %1100 = vmatpush2.msra.mxu0 0.0
  %1101 = vmatprep.subr.mxu0 0.0
  %1102 = vmatpush2.msra.mxu0 0.0
  %1103 = vmatprep.subr.mxu0 0.0
  %1104 = vmatpush2.msra.mxu0 0.0
  %1105 = vmatprep.subr.mxu0 0.0
  %1106 = vmatpush2.msra.mxu0 0.0
  %1107 = vmatprep.subr.mxu0 0.0
  %1108 = vmatpush2.msra.mxu0 0.0
  %1109 = vmatprep.subr.mxu0 0.0
  %1110 = vmatpush2.msra.mxu0 0.0
  %1111 = vmatprep.subr.mxu0 0.0
  %1112 = vmatpush2.msra.mxu0 0.0
  %1113 = vmatprep.subr.mxu0 0.0
  %1114 = vmatpush2.msra.mxu0 0.0
  %1115 = vmatprep.subr.mxu0 0.0
  %1116 = vmatpush2.msra.mxu0 0.0
  %1117 = vmatprep.subr.mxu0 0.0
  %1118 = vmatpush2.msra.mxu0 0.0
  %1119 = vmatprep.mubr.f32.mxu0 0.0
  %v1120 = vand.u32 %v565, 4294901760
  %1121 = vmatmul.mubr.f32.gmra.mxu0 %v1120
  %v1122 = vpop.f32.mrf.mxu0
  %v1123 = vadd.f32 %v1004, %v1122
  %v1124 = vpop.f32.mrf.mxu0
  %1125 = vdwg.mxu0
  %1126 = vmatprep.subr.mxu0 0.0
  %v1127 = vand.u32 %v564, 4294901760
  %1128 = vmatpush1.msra.mxu0 %v1127
  %1129 = vmatprep.subr.mxu0 0.0
  %v1130 = vand.u32 %v563, 4294901760
  %1131 = vmatpush1.msra.mxu0 %v1130
  %1132 = vmatprep.subr.mxu0 0.0
  %v1133 = vand.u32 %v562, 4294901760
  %1134 = vmatpush1.msra.mxu0 %v1133
  %1135 = vmatprep.subr.mxu0 0.0
  %v1136 = vand.u32 %v561, 4294901760
  %1137 = vmatpush1.msra.mxu0 %v1136
  %1138 = vmatprep.subr.mxu0 0.0
  %v1139 = vand.u32 %v560, 4294901760
  %1140 = vmatpush1.msra.mxu0 %v1139
  %1141 = vmatprep.subr.mxu0 0.0
  %v1142 = vand.u32 %v559, 4294901760
  %1143 = vmatpush1.msra.mxu0 %v1142
  %1144 = vmatprep.subr.mxu0 0.0
  %v1145 = vand.u32 %v558, 4294901760
  %1146 = vmatpush1.msra.mxu0 %v1145
  %1147 = vmatprep.subr.mxu0 0.0
  %v1148 = vand.u32 %v557, 4294901760
  %1149 = vmatpush1.msra.mxu0 %v1148
  %1150 = vmatprep.subr.mxu0 0.0
  %v1151 = vand.u32 %v556, 4294901760
  %1152 = vmatpush1.msra.mxu0 %v1151
  %1153 = vmatprep.subr.mxu0 0.0
  %v1154 = vand.u32 %v555, 4294901760
  %1155 = vmatpush1.msra.mxu0 %v1154
  %1156 = vmatprep.subr.mxu0 0.0
  %v1157 = vand.u32 %v554, 4294901760
  %1158 = vmatpush1.msra.mxu0 %v1157
  %1159 = vmatprep.subr.mxu0 0.0
  %v1160 = vand.u32 %v553, 4294901760
  %1161 = vmatpush1.msra.mxu0 %v1160
  %1162 = vmatprep.subr.mxu0 0.0
  %v1163 = vand.u32 %v552, 4294901760
  %1164 = vmatpush1.msra.mxu0 %v1163
  %1165 = vmatprep.subr.mxu0 0.0
  %v1166 = vand.u32 %v551, 4294901760
  %1167 = vmatpush1.msra.mxu0 %v1166
  %1168 = vmatprep.subr.mxu0 0.0
  %v1169 = vand.u32 %v550, 4294901760
  %1170 = vmatpush1.msra.mxu0 %v1169
  %1171 = vmatprep.subr.mxu0 0.0
  %v1172 = vand.u32 %v549, 4294901760
  %1173 = vmatpush1.msra.mxu0 %v1172
  %1174 = vmatprep.subr.mxu0 0.0
  %1175 = vmatpush2.msra.mxu0 0.0
  %1176 = vmatprep.subr.mxu0 0.0
  %1177 = vmatpush2.msra.mxu0 0.0
  %1178 = vmatprep.subr.mxu0 0.0
  %1179 = vmatpush2.msra.mxu0 0.0
  %1180 = vmatprep.subr.mxu0 0.0
  %1181 = vmatpush2.msra.mxu0 0.0
  %1182 = vmatprep.subr.mxu0 0.0
  %1183 = vmatpush2.msra.mxu0 0.0
  %1184 = vmatprep.subr.mxu0 0.0
  %1185 = vmatpush2.msra.mxu0 0.0
  %1186 = vmatprep.subr.mxu0 0.0
  %1187 = vmatpush2.msra.mxu0 0.0
  %1188 = vmatprep.subr.mxu0 0.0
  %1189 = vmatpush2.msra.mxu0 0.0
  %1190 = vmatprep.subr.mxu0 0.0
  %1191 = vmatpush2.msra.mxu0 0.0
  %1192 = vmatprep.subr.mxu0 0.0
  %1193 = vmatpush2.msra.mxu0 0.0
  %1194 = vmatprep.subr.mxu0 0.0
  %1195 = vmatpush2.msra.mxu0 0.0
  %1196 = vmatprep.subr.mxu0 0.0
  %1197 = vmatpush2.msra.mxu0 0.0
  %1198 = vmatprep.subr.mxu0 0.0
  %1199 = vmatpush2.msra.mxu0 0.0
  %1200 = vmatprep.subr.mxu0 0.0
  %1201 = vmatpush2.msra.mxu0 0.0
  %1202 = vmatprep.subr.mxu0 0.0
  %1203 = vmatpush2.msra.mxu0 0.0
  %1204 = vmatprep.subr.mxu0 0.0
  %1205 = vmatpush2.msra.mxu0 0.0
  %1206 = vmatprep.mubr.f32.mxu0 0.0
  %v1207 = vand.u32 %v565, 4294901760
  %1208 = vmatmul.mubr.f32.gmra.mxu0 %v1207
  %v1209 = vpop.f32.mrf.mxu0
  %v1210 = vadd.f32 %v1123, %v1209
  %v1211 = vpop.f32.mrf.mxu0
  %1212 = vdwg.mxu0
  %v1213 = vrot.slane %v1210, 4
  %v1214 = vmax.f32 %v1210, %v1213
  %v1215 = vrot.slane %v1214, 2
  %v1216 = vmax.f32 %v1214, %v1215
  %v1217 = vrot.slane %v1216, 1
  %v1218 = vmax.f32 %v1216, %v1217
  %v1219 = vsub.f32 %v1210, %v1218
  %v1220 = vmul.f32 %v1219, 1.442695
  %v1221 = vpow.pop %v1220
  %v1222 = vrot.slane %v1221, 4
  %v1223 = vadd.f32 %v1221, %v1222
  %v1224 = vrot.slane %v1223, 2
  %v1225 = vadd.f32 %v1223, %v1224
  %v1226 = vrot.slane %v1225, 1
  %v1227 = vadd.f32 %v1225, %v1226
  %v1228 = vrcp.pop %v1227
  %v1229 = vmul.f32 %v1227, %v1228
  %v1230 = vsub.f32 2.0, %v1229
  %v1231 = vmul.f32 %v1228, %v1230
  %v1232 = vmul.f32 %v1221, %v1231
  %1233 = vst [vmem:[%s5] sm:$0xff] %v1232
  // Predicated region
  $region22: #{iris_net_forward.1} parent=0 // pred_check
    _
  $region23: #{iris_net_forward.1} parent=0 // pred_check_branch
    %1235 = sbr.rel (0) target = $region25
  $region24: #{iris_net_forward.1} parent=0 // pred_region
    _
  $region25: #{iris_net_forward.1} parent=0 // pred_fallthru
    _
  // Predicated region
  $region26: #{iris_net_forward.1} parent=0 // pred_check
    _
  $region27: #{iris_net_forward.1} parent=0 // pred_check_branch
    %1237 = sbr.rel (0) target = $region29
  $region28: #{iris_net_forward.1} parent=0 // pred_region
    _
  $region29: #{iris_net_forward.1} parent=0 // pred_fallthru
    _

</llo_original>
